<compile_context>
chip_gen: v5e
topology: v5e:2x2
jax: 0.10.0
libtpu: 0.0.40
codegen_flags: <defaults>
</compile_context>

<pallas_src>
import jax
import jax.numpy as jnp
from jax.experimental import pallas as pl
from jax.experimental.pallas import tpu as pltpu


def _dhead_kernel(x_ref, w_ref, b_ref, o_ref):
    # x_ref: (1, C, T) f32 VMEM   -- one batch element, one spatial tile
    # w_ref: (1, C)    f32 VMEM   -- conv weight row
    # b_ref: (1,)      f32 SMEM   -- conv bias
    # o_ref: (1, 1, T) f32 VMEM
    x = x_ref[0]                                                   # (C, T)
    y = jnp.dot(w_ref[...], x, preferred_element_type=jnp.float32)  # (1, T)
    o_ref[0] = y + b_ref[0]


def _pick_hw_tile(hw):
    """Largest lane-aligned spatial tile; fall back to the full dim (allowed
    by the (8,128) rule when the block equals the array extent)."""
    if hw % 128 != 0:
        return hw
    for t in (1024, 512, 256, 128):
        if hw % t == 0:
            return t
    return hw


def dhead_forward(x_nchw, weight, bias):
    """x_nchw: (N, 1024, H, W); weight: (1, 1024, 1, 1); bias: (1,) -> (N*H*W,)"""
    N, C, H, W = x_nchw.shape
    HW = H * W

    # Free reshape in NCHW layout -- no transpose, no extra HBM pass.
    x3d = x_nchw.reshape(N, C, HW).astype(jnp.float32)
    w2d = weight.reshape(1, C).astype(jnp.float32)
    b = bias.astype(jnp.float32)

    t_hw = _pick_hw_tile(HW)
    grid = (N, HW // t_hw)

    out = pl.pallas_call(
        _dhead_kernel,
        out_shape=jax.ShapeDtypeStruct((N, 1, HW), jnp.float32),
        grid=grid,
        in_specs=[
            pl.BlockSpec((1, C, t_hw), lambda n, j: (n, 0, j)),   # x tile
            pl.BlockSpec((1, C), lambda n, j: (0, 0)),            # weight (resident)
            pl.BlockSpec(memory_space=pltpu.SMEM),                # bias scalar
        ],
        out_specs=pl.BlockSpec((1, 1, t_hw), lambda n, j: (n, 0, j)),
        compiler_params=pltpu.CompilerParams(
            dimension_semantics=("parallel", "parallel"),
        ),
    )(x3d, w2d, b)

    return out.reshape(N * HW)  # == torch.flatten(conv(x)) element order


def dhead_reference(x_nchw, weight, bias):
    # Pure-JAX reference: 1x1 conv == einsum over channel dim, then flatten.
    y = jnp.einsum("nchw,oc->nohw", x_nchw, weight.reshape(1, -1)) + bias.reshape(1, 1, 1, 1)
    return y.reshape(-1)


if __name__ == "__main__":
    key = jax.random.PRNGKey(0)
    kx, kw, kb = jax.random.split(key, 3)

    # Small shapes consistent with the module: C is fixed at 1024 by Conv2d(1024, 1, 1).
    N, C, H, W = 2, 1024, 4, 4
    x = jax.random.normal(kx, (N, C, H, W), dtype=jnp.float32)

    # Deterministic synthetic parameters (Conv2d(1024, 1, 1): weight (1,1024,1,1), bias (1,)).
    weight = jax.random.normal(kw, (1, C, 1, 1), dtype=jnp.float32) * 0.02
    bias = jax.random.normal(kb, (1,), dtype=jnp.float32) * 0.02

    out = dhead_forward(x, weight, bias)
    jax.block_until_ready(out)

    ref = dhead_reference(x, weight, bias)
    assert out.shape == (N * H * W,), out.shape
    assert jnp.allclose(out, ref, atol=1e-4, rtol=1e-4), float(jnp.max(jnp.abs(out - ref)))

    print("KERNEL_OK")
</pallas_src>

<mosaic_0001>
module attributes {stable_mosaic.version = 11 : i64} {
  func.func @_dhead_kernel(%arg0: i32, %arg1: i32, %arg2: memref<1x1024x16xf32, #tpu.memory_space<vmem>>, %arg3: memref<1x1024xf32, #tpu.memory_space<vmem>>, %arg4: memref<1xf32, #tpu.memory_space<smem>>, %arg5: memref<1x1x16xf32, #tpu.memory_space<vmem>>) attributes {dimension_semantics = [#tpu.dimension_semantics<parallel>, #tpu.dimension_semantics<parallel>], iteration_bounds = array<i64: 2, 1>, scalar_prefetch = 0 : i64, scratch_operands = 0 : i64, tpu.core_type = #tpu.core_type<tc>, window_params = [{transform_indices = @transform_0, window_bounds = array<i64: 1, 1024, 16>}, {pipeline_mode = #tpu.pipeline_mode<synchronous>, transform_indices = @transform_1, window_bounds = array<i64: 1, 1024>}, {transform_indices = @transform_2, window_bounds = array<i64: 1>}, {transform_indices = @transform_3, window_bounds = array<i64: 1, 1, 16>}]} {
    %c0 = arith.constant 0 : index
    %c0_0 = arith.constant 0 : index
    %c0_1 = arith.constant 0 : index
    %0 = vector.load %arg2[%c0, %c0_0, %c0_1] : memref<1x1024x16xf32, #tpu.memory_space<vmem>>, vector<1x1024x16xf32>
    %1 = vector.shape_cast %0 : vector<1x1024x16xf32> to vector<1024x16xf32>
    %c0_2 = arith.constant 0 : index
    %c0_3 = arith.constant 0 : index
    %2 = vector.load %arg3[%c0_2, %c0_3] : memref<1x1024xf32, #tpu.memory_space<vmem>>, vector<1x1024xf32>
    %cst = arith.constant dense<0.000000e+00> : vector<1x16xf32>
    %3 = tpu.matmul %2, %1, %cst {dimension_numbers = #tpu.dot_dimension_numbers<[1], [0], [0], [1], [0, 0, 1, 1], [], []>} : vector<1x1024xf32>, vector<1024x16xf32>, vector<1x16xf32> -> vector<1x16xf32>
    %c0_4 = arith.constant 0 : index
    %4 = memref.load %arg4[%c0_4] : memref<1xf32, #tpu.memory_space<smem>>
    %5 = vector.broadcast %4 : f32 to vector<1x16xf32>
    %6 = arith.addf %3, %5 : vector<1x16xf32>
    %c0_5 = arith.constant 0 : index
    %c0_6 = arith.constant 0 : index
    %c0_7 = arith.constant 0 : index
    %7 = vector.load %arg5[%c0_5, %c0_6, %c0_7] : memref<1x1x16xf32, #tpu.memory_space<vmem>>, vector<1x1x16xf32>
    %8 = vector.shape_cast %7 : vector<1x1x16xf32> to vector<1x16xf32>
    %9 = vector.shape_cast %6 : vector<1x16xf32> to vector<1x1x16xf32>
    tpu.vector_store %arg5[%c0_5, %c0_6, %c0_7], %9 {strides = array<i32>} : memref<1x1x16xf32, #tpu.memory_space<vmem>>, vector<1x1x16xf32>,
    return
  }
  func.func @transform_0(%arg0: i32, %arg1: i32) -> (i32, i32, i32) {
    %c0_i32 = arith.constant 0 : i32
    %c0_i32_0 = arith.constant 0 : i32
    return %arg0, %c0_i32, %arg1 : i32, i32, i32
  }
  func.func @transform_1(%arg0: i32, %arg1: i32) -> (i32, i32) {
    %c0_i32 = arith.constant 0 : i32
    %c0_i32_0 = arith.constant 0 : i32
    %c0_i32_1 = arith.constant 0 : i32
    return %c0_i32, %c0_i32_0 : i32, i32
  }
  func.func @transform_2(%arg0: i32, %arg1: i32) -> i32 {
    %c0_i32 = arith.constant 0 : i32
    %c0_i32_0 = arith.constant 0 : i32
    return %c0_i32 : i32
  }
  func.func @transform_3(%arg0: i32, %arg1: i32) -> (i32, i32, i32) {
    %c0_i32 = arith.constant 0 : i32
    %c0_i32_0 = arith.constant 0 : i32
    return %arg0, %c0_i32, %arg1 : i32, i32, i32
  }
}

</mosaic_0001>

<llo_original>
// kernel: tpu_custom_call.1
$region0: #{tpu_custom_call.1}
  #allocation0 [shape = 'u32[]', space=smem, size = 0x4, offset = 0x4, fixed_abs, tag = 'smem constant byte address 0x4 - core index']
  #allocation1 [shape = 'u32[72,128]{1,0:T(1,128)}', space=vmem, size = 0x9000, scoped, tag = 'internal scratch']
  #allocation2 [shape = 'f32[1]{0:T(128)S(6)}', space=smem, size = 0x200, scoped, tag = 'scoped memory for tpu_custom_call.1']
  %s0 = inlined_call_operand.vmem [shape: f32[2,1024,16], index: 0, kind: input, shape index: {}]
  %s1 = inlined_call_operand.vmem [shape: f32[1,1024], index: 1, kind: input, shape index: {}]
  %s2 = inlined_call_operand.<no memory space> [shape: f32[1], index: 2, kind: input, shape index: {}]
  %s3 = inlined_call_operand.hbm [shape: f32[2,1,16], index: 3, kind: output, shape index: {}]
  %s4 = sld [smem:[#allocation0]]
  $region45: #{tpu_custom_call.1} parent=0
    _
  %s6 = ssub.s32 1, %s4
  %s7 = scalar_select 0, %s6, %s4
  %8 = sst [smem:[#allocation2]] %s2
  $region1: #{tpu_custom_call.1} parent=0
    #allocation3 [shape = 'u8[1024]{0}', space=vmem, size = 0x400, scoped, tag = 'output window, operand 0']
    #allocation4 [shape = 's32[2]{0}', space=sflag, size = 0x8, scoped, tag = 'scoped memory for tpu_custom_call.1']
    %9 = vsyncpa [#allocation4], 0
    %s10 = scalar_lea.sflag [#allocation4], 1
    %11 = vsyncpa %s10, 0
    loop: start=0, step=1, limit=4
    $region2: #{tpu_custom_call.1} parent=1 // loop_pre_header
      _
    $region3: #{tpu_custom_call.1} parent=1 // loop_header
      %s13 = sphi 0, %s17
      %p14 = scmp.ge.s32.totalorder %s13, 4
      %s20 = sphi 0, %s32
      %s21 = sphi 0, %s28
      %s22 = sphi 0, %s20
      %s23 = sphi 0, %s21
      %s24 = sphi 0, %s22
      %s25 = sphi 0, %s23
      %s37 = sphi 0, %s39
      %s40 = sphi 0, %s37
      %s41 = sphi 0, %s40
      %s57 = sphi 0, %s41
      %s61 = sphi 0, %s61
      %s63 = sphi 0, %s61
      %s64 = sphi 0, %s63
      %s78 = sphi 0, %s64
      %s82 = sphi 0, %s82
      %s84 = sphi 0, %s82
      %s85 = sphi 0, %s84
      %s99 = sphi 0, %s85
      %s107 = sphi 0, %s109
      %s110 = sphi 0, %s107
      %s111 = sphi 0, %s110
      %s127 = sphi 0, %s111
    $region4: #{tpu_custom_call.1} parent=1 // loop_header_branch
      %16 = sbr.rel (%p14) target = $region8
    $region5: #{tpu_custom_call.1} parent=1 // loop_body
      %s18 = ssub.s32 %s13, 1
      %s19 = ssub.s32 %s13, 2
      %s26 = sadd.s32 1, %s21
      %p27 = scmp.ge.s32.totalorder %s26, 1
      %s28 = scalar_select %p27, 0, %s26
      %s29 = sadd.s32 1, %s20
      %s30 = scalar_select %p27, %s29, %s20
      %p31 = scmp.ge.s32.totalorder %s30, 2
      %s32 = scalar_select %p31, 0, %s30
      %s33 = ssub.s32 %s20, %s32
      %s34 = ssub.s32 %s21, %s28
      %s35 = sor.u32 %s33, %s34
      %p36 = scmp.eq.s32.totalorder %s35, 0
      %s38 = sadd.s32 %s37, 1
      %s39 = scalar_select %p36, %s37, %s38
      %p42 = pneg %p36
      %p43 = scmp.eq.s32.totalorder %s13, 1
      %p44 = por %p42, %p43
      %p45 = scmp.ne.s32.totalorder %s37, %s40
      %p46 = scmp.eq.s32.totalorder %s13, 0
      %p47 = por %p45, %p46
      %p48 = scmp.ne.s32.totalorder %s37, %s40
      %p49 = scmp.eq.s32.totalorder %s18, 1
      %p50 = por %p48, %p49
      %p51 = scmp.ne.s32.totalorder %s40, %s41
      %p52 = scmp.eq.s32.totalorder %s18, 0
      %p53 = por %p51, %p52
      %p54 = scmp.ne.s32.totalorder %s40, %s41
      %p55 = scmp.eq.s32.totalorder %s19, 1
      %p56 = por %p54, %p55
      %p58 = scmp.ne.s32.totalorder %s41, %s57
      %p59 = scmp.eq.s32.totalorder %s19, 0
      %p60 = por %p58, %p59
      %s62 = sadd.s32 %s61, 1
      %p65 = scmp.eq.s32.totalorder %s13, 1
      %p66 = scmp.ne.s32.totalorder %s61, %s63
      %p67 = scmp.eq.s32.totalorder %s13, 0
      %p68 = por %p66, %p67
      %p69 = scmp.ne.s32.totalorder %s61, %s63
      %p70 = scmp.eq.s32.totalorder %s18, 1
      %p71 = por %p69, %p70
      %p72 = scmp.ne.s32.totalorder %s63, %s64
      %p73 = scmp.eq.s32.totalorder %s18, 0
      %p74 = por %p72, %p73
      %p75 = scmp.ne.s32.totalorder %s63, %s64
      %p76 = scmp.eq.s32.totalorder %s19, 1
      %p77 = por %p75, %p76
      %p79 = scmp.ne.s32.totalorder %s64, %s78
      %p80 = scmp.eq.s32.totalorder %s19, 0
      %p81 = por %p79, %p80
      %s83 = sadd.s32 %s82, 1
      %p86 = scmp.eq.s32.totalorder %s13, 1
      %p87 = scmp.ne.s32.totalorder %s82, %s84
      %p88 = scmp.eq.s32.totalorder %s13, 0
      %p89 = por %p87, %p88
      %p90 = scmp.ne.s32.totalorder %s82, %s84
      %p91 = scmp.eq.s32.totalorder %s18, 1
      %p92 = por %p90, %p91
      %p93 = scmp.ne.s32.totalorder %s84, %s85
      %p94 = scmp.eq.s32.totalorder %s18, 0
      %p95 = por %p93, %p94
      %p96 = scmp.ne.s32.totalorder %s84, %s85
      %p97 = scmp.eq.s32.totalorder %s19, 1
      %p98 = por %p96, %p97
      %p100 = scmp.ne.s32.totalorder %s85, %s99
      %p101 = scmp.eq.s32.totalorder %s19, 0
      %p102 = por %p100, %p101
      %s103 = ssub.s32 %s20, %s32
      %s104 = ssub.s32 %s21, %s28
      %s105 = sor.u32 %s103, %s104
      %p106 = scmp.eq.s32.totalorder %s105, 0
      %s108 = sadd.s32 %s107, 1
      %s109 = scalar_select %p106, %s107, %s108
      %p112 = pneg %p106
      %p113 = scmp.eq.s32.totalorder %s13, 1
      %p114 = por %p112, %p113
      %p115 = scmp.ne.s32.totalorder %s107, %s110
      %p116 = scmp.eq.s32.totalorder %s13, 0
      %p117 = por %p115, %p116
      %p118 = scmp.ne.s32.totalorder %s107, %s110
      %p119 = scmp.eq.s32.totalorder %s18, 1
      %p120 = por %p118, %p119
      %p121 = scmp.ne.s32.totalorder %s110, %s111
      %p122 = scmp.eq.s32.totalorder %s18, 0
      %p123 = por %p121, %p122
      %p124 = scmp.ne.s32.totalorder %s110, %s111
      %p125 = scmp.eq.s32.totalorder %s19, 1
      %p126 = por %p124, %p125
      %p128 = scmp.ne.s32.totalorder %s111, %s127
      %p129 = scmp.eq.s32.totalorder %s19, 0
      %p130 = por %p128, %p129
      %p131 = scmp.le.s32.totalorder 1, %s13
      %p132 = scmp.lt.s32.totalorder %s13, 3
      %p133 = pnand %p131, %p132
      %p134 = pneg %p133
      // Predicated region
      $region9: #{tpu_custom_call.1} parent=5 // pred_check
        _
      $region10: #{tpu_custom_call.1} parent=5 // pred_check_branch
        %136 = sbr.rel (%p133) target = $region12
      $region11: #{tpu_custom_call.1} parent=5 // pred_region
        %s137 = ssub.s32 %s13, 1
        // Predicated region
        $region13: #{tpu_custom_call.1} parent=11 // pred_check
          %p138 = pneg %p74
        $region14: #{tpu_custom_call.1} parent=11 // pred_check_branch
          %140 = sbr.rel (%p138) target = $region16
        $region15: #{tpu_custom_call.1} parent=11 // pred_region
          _
        $region16: #{tpu_custom_call.1} parent=11 // pred_fallthru
          _
        // Predicated region
        $region17: #{tpu_custom_call.1} parent=11 // pred_check
          %p141 = pneg %p95
        $region18: #{tpu_custom_call.1} parent=11 // pred_check_branch
          %143 = sbr.rel (%p141) target = $region20
        $region19: #{tpu_custom_call.1} parent=11 // pred_region
          _
        $region20: #{tpu_custom_call.1} parent=11 // pred_fallthru
          _
      $region12: #{tpu_custom_call.1} parent=5 // pred_fallthru
        _
      %p144 = scmp.lt.s32.totalorder %s13, 2
      // Predicated region
      $region21: #{tpu_custom_call.1} parent=5 // pred_check
        %p145 = pneg %p144
      $region22: #{tpu_custom_call.1} parent=5 // pred_check_branch
        %147 = sbr.rel (%p145) target = $region24
      $region23: #{tpu_custom_call.1} parent=5 // pred_region
        // Predicated region
        $region25: #{tpu_custom_call.1} parent=23 // pred_check
          %p148 = pneg %p47
        $region26: #{tpu_custom_call.1} parent=23 // pred_check_branch
          %150 = sbr.rel (%p148) target = $region28
        $region27: #{tpu_custom_call.1} parent=23 // pred_region
          %p151 = scmp.lt.s32.totalorder %s20, 1
          %s152 = scalar_select %p151, %s20, 1
          %p153 = scmp.lt.s32.totalorder %s21, 0
          %s154 = scalar_select %p153, %s21, 0
          %s155 = smul.addr %s152, 128
          %s156 = sadd.s32 %s154, %s155
          %s157 = smul.addr %s156, 8
          %s158 = scalar_lea.vmem %s0, %s157
        $region28: #{tpu_custom_call.1} parent=23 // pred_fallthru
          _
      $region24: #{tpu_custom_call.1} parent=5 // pred_fallthru
        _
      %p159 = scmp.le.s32.totalorder 1, %s13
      %p160 = scmp.lt.s32.totalorder %s13, 3
      %p161 = pnand %p159, %p160
      %p162 = pneg %p161
      // Predicated region
      $region29: #{tpu_custom_call.1} parent=5 // pred_check
        _
      $region30: #{tpu_custom_call.1} parent=5 // pred_check_branch
        %164 = sbr.rel (%p161) target = $region32
      $region31: #{tpu_custom_call.1} parent=5 // pred_region
        %s165 = ssub.s32 %s13, 1
        %p166 = scmp.lt.s32.totalorder %s22, 1
        %s167 = scalar_select %p166, %s22, 1
        %p168 = scmp.lt.s32.totalorder %s23, 0
        %s169 = scalar_select %p168, %s23, 0
        %s170 = smul.addr %s167, 128
        %s171 = sadd.s32 %s169, %s170
        %s172 = smul.addr %s171, 8
        %s173 = scalar_lea.vmem %s0, %s172
        %p174 = pneg %p53
        %p175 = pneg %p50
        %p176 = pneg %p74
        %p177 = pneg %p71
        %p178 = pneg %p95
        %p179 = pneg %p92
        %p180 = pneg %p123
        %p181 = pneg %p120
        %s182 = sand.u32 %s110, 1
        %s183 = scalar_lea.sflag [#allocation4], %s182
        %s184 = sand.u32 %s110, 1
        %s185 = scalar_lea.vmem [#allocation3], %s184
        %p186 = scmp.lt.s32.totalorder %s22, 1
        %s187 = scalar_select %p186, %s22, 1
        %p188 = scmp.lt.s32.totalorder %s23, 0
        %s189 = scalar_select %p188, %s23, 0
        %s190 = smul.addr %s187, 128
        %s191 = sadd.s32 %s189, %s190
        %s192 = smul.addr %s191, 8
        %s193 = scalar_lea.vmem %s0, %s192
        %v194 = vld [vmem:[%s193] sm:$0xff]
        %v195 = vld [vmem:[%s193 + $0x8] sm:$0xff]
        %v196 = vld [vmem:[%s193 + $0x10] sm:$0xff]
        %v197 = vld [vmem:[%s193 + $0x18] sm:$0xff]
        %v198 = vld [vmem:[%s193 + $0x20] sm:$0xff]
        %v199 = vld [vmem:[%s193 + $0x28] sm:$0xff]
        %v200 = vld [vmem:[%s193 + $0x30] sm:$0xff]
        %v201 = vld [vmem:[%s193 + $0x38] sm:$0xff]
        %v202 = vld [vmem:[%s193 + $0x40] sm:$0xff]
        %v203 = vld [vmem:[%s193 + $0x48] sm:$0xff]
        %v204 = vld [vmem:[%s193 + $0x50] sm:$0xff]
        %v205 = vld [vmem:[%s193 + $0x58] sm:$0xff]
        %v206 = vld [vmem:[%s193 + $0x60] sm:$0xff]
        %v207 = vld [vmem:[%s193 + $0x68] sm:$0xff]
        %v208 = vld [vmem:[%s193 + $0x70] sm:$0xff]
        %v209 = vld [vmem:[%s193 + $0x78] sm:$0xff]
        %v210 = vld [vmem:[%s193 + $0x80] sm:$0xff]
        %v211 = vld [vmem:[%s193 + $0x88] sm:$0xff]
        %v212 = vld [vmem:[%s193 + $0x90] sm:$0xff]
        %v213 = vld [vmem:[%s193 + $0x98] sm:$0xff]
        %v214 = vld [vmem:[%s193 + $0xa0] sm:$0xff]
        %v215 = vld [vmem:[%s193 + $0xa8] sm:$0xff]
        %v216 = vld [vmem:[%s193 + $0xb0] sm:$0xff]
        %v217 = vld [vmem:[%s193 + $0xb8] sm:$0xff]
        %v218 = vld [vmem:[%s193 + $0xc0] sm:$0xff]
        %v219 = vld [vmem:[%s193 + $0xc8] sm:$0xff]
        %v220 = vld [vmem:[%s193 + $0xd0] sm:$0xff]
        %v221 = vld [vmem:[%s193 + $0xd8] sm:$0xff]
        %v222 = vld [vmem:[%s193 + $0xe0] sm:$0xff]
        %v223 = vld [vmem:[%s193 + $0xe8] sm:$0xff]
        %v224 = vld [vmem:[%s193 + $0xf0] sm:$0xff]
        %v225 = vld [vmem:[%s193 + $0xf8] sm:$0xff]
        %v226 = vld [vmem:[%s193 + $0x100] sm:$0xff]
        %v227 = vld [vmem:[%s193 + $0x108] sm:$0xff]
        %v228 = vld [vmem:[%s193 + $0x110] sm:$0xff]
        %v229 = vld [vmem:[%s193 + $0x118] sm:$0xff]
        %v230 = vld [vmem:[%s193 + $0x120] sm:$0xff]
        %v231 = vld [vmem:[%s193 + $0x128] sm:$0xff]
        %v232 = vld [vmem:[%s193 + $0x130] sm:$0xff]
        %v233 = vld [vmem:[%s193 + $0x138] sm:$0xff]
        %v234 = vld [vmem:[%s193 + $0x140] sm:$0xff]
        %v235 = vld [vmem:[%s193 + $0x148] sm:$0xff]
        %v236 = vld [vmem:[%s193 + $0x150] sm:$0xff]
        %v237 = vld [vmem:[%s193 + $0x158] sm:$0xff]
        %v238 = vld [vmem:[%s193 + $0x160] sm:$0xff]
        %v239 = vld [vmem:[%s193 + $0x168] sm:$0xff]
        %v240 = vld [vmem:[%s193 + $0x170] sm:$0xff]
        %v241 = vld [vmem:[%s193 + $0x178] sm:$0xff]
        %v242 = vld [vmem:[%s193 + $0x180] sm:$0xff]
        %v243 = vld [vmem:[%s193 + $0x188] sm:$0xff]
        %v244 = vld [vmem:[%s193 + $0x190] sm:$0xff]
        %v245 = vld [vmem:[%s193 + $0x198] sm:$0xff]
        %v246 = vld [vmem:[%s193 + $0x1a0] sm:$0xff]
        %v247 = vld [vmem:[%s193 + $0x1a8] sm:$0xff]
        %v248 = vld [vmem:[%s193 + $0x1b0] sm:$0xff]
        %v249 = vld [vmem:[%s193 + $0x1b8] sm:$0xff]
        %v250 = vld [vmem:[%s193 + $0x1c0] sm:$0xff]
        %v251 = vld [vmem:[%s193 + $0x1c8] sm:$0xff]
        %v252 = vld [vmem:[%s193 + $0x1d0] sm:$0xff]
        %v253 = vld [vmem:[%s193 + $0x1d8] sm:$0xff]
        %v254 = vld [vmem:[%s193 + $0x1e0] sm:$0xff]
        %v255 = vld [vmem:[%s193 + $0x1e8] sm:$0xff]
        %v256 = vld [vmem:[%s193 + $0x1f0] sm:$0xff]
        %v257 = vld [vmem:[%s193 + $0x1f8] sm:$0xff]
        %v258 = vld [vmem:[%s193 + $0x200] sm:$0xff]
        %v259 = vld [vmem:[%s193 + $0x208] sm:$0xff]
        %v260 = vld [vmem:[%s193 + $0x210] sm:$0xff]
        %v261 = vld [vmem:[%s193 + $0x218] sm:$0xff]
        %v262 = vld [vmem:[%s193 + $0x220] sm:$0xff]
        %v263 = vld [vmem:[%s193 + $0x228] sm:$0xff]
        %v264 = vld [vmem:[%s193 + $0x230] sm:$0xff]
        %v265 = vld [vmem:[%s193 + $0x238] sm:$0xff]
        %v266 = vld [vmem:[%s193 + $0x240] sm:$0xff]
        %v267 = vld [vmem:[%s193 + $0x248] sm:$0xff]
        %v268 = vld [vmem:[%s193 + $0x250] sm:$0xff]
        %v269 = vld [vmem:[%s193 + $0x258] sm:$0xff]
        %v270 = vld [vmem:[%s193 + $0x260] sm:$0xff]
        %v271 = vld [vmem:[%s193 + $0x268] sm:$0xff]
        %v272 = vld [vmem:[%s193 + $0x270] sm:$0xff]
        %v273 = vld [vmem:[%s193 + $0x278] sm:$0xff]
        %v274 = vld [vmem:[%s193 + $0x280] sm:$0xff]
        %v275 = vld [vmem:[%s193 + $0x288] sm:$0xff]
        %v276 = vld [vmem:[%s193 + $0x290] sm:$0xff]
        %v277 = vld [vmem:[%s193 + $0x298] sm:$0xff]
        %v278 = vld [vmem:[%s193 + $0x2a0] sm:$0xff]
        %v279 = vld [vmem:[%s193 + $0x2a8] sm:$0xff]
        %v280 = vld [vmem:[%s193 + $0x2b0] sm:$0xff]
        %v281 = vld [vmem:[%s193 + $0x2b8] sm:$0xff]
        %v282 = vld [vmem:[%s193 + $0x2c0] sm:$0xff]
        %v283 = vld [vmem:[%s193 + $0x2c8] sm:$0xff]
        %v284 = vld [vmem:[%s193 + $0x2d0] sm:$0xff]
        %v285 = vld [vmem:[%s193 + $0x2d8] sm:$0xff]
        %v286 = vld [vmem:[%s193 + $0x2e0] sm:$0xff]
        %v287 = vld [vmem:[%s193 + $0x2e8] sm:$0xff]
        %v288 = vld [vmem:[%s193 + $0x2f0] sm:$0xff]
        %v289 = vld [vmem:[%s193 + $0x2f8] sm:$0xff]
        %v290 = vld [vmem:[%s193 + $0x300] sm:$0xff]
        %v291 = vld [vmem:[%s193 + $0x308] sm:$0xff]
        %v292 = vld [vmem:[%s193 + $0x310] sm:$0xff]
        %v293 = vld [vmem:[%s193 + $0x318] sm:$0xff]
        %v294 = vld [vmem:[%s193 + $0x320] sm:$0xff]
        %v295 = vld [vmem:[%s193 + $0x328] sm:$0xff]
        %v296 = vld [vmem:[%s193 + $0x330] sm:$0xff]
        %v297 = vld [vmem:[%s193 + $0x338] sm:$0xff]
        %v298 = vld [vmem:[%s193 + $0x340] sm:$0xff]
        %v299 = vld [vmem:[%s193 + $0x348] sm:$0xff]
        %v300 = vld [vmem:[%s193 + $0x350] sm:$0xff]
        %v301 = vld [vmem:[%s193 + $0x358] sm:$0xff]
        %v302 = vld [vmem:[%s193 + $0x360] sm:$0xff]
        %v303 = vld [vmem:[%s193 + $0x368] sm:$0xff]
        %v304 = vld [vmem:[%s193 + $0x370] sm:$0xff]
        %v305 = vld [vmem:[%s193 + $0x378] sm:$0xff]
        %v306 = vld [vmem:[%s193 + $0x380] sm:$0xff]
        %v307 = vld [vmem:[%s193 + $0x388] sm:$0xff]
        %v308 = vld [vmem:[%s193 + $0x390] sm:$0xff]
        %v309 = vld [vmem:[%s193 + $0x398] sm:$0xff]
        %v310 = vld [vmem:[%s193 + $0x3a0] sm:$0xff]
        %v311 = vld [vmem:[%s193 + $0x3a8] sm:$0xff]
        %v312 = vld [vmem:[%s193 + $0x3b0] sm:$0xff]
        %v313 = vld [vmem:[%s193 + $0x3b8] sm:$0xff]
        %v314 = vld [vmem:[%s193 + $0x3c0] sm:$0xff]
        %v315 = vld [vmem:[%s193 + $0x3c8] sm:$0xff]
        %v316 = vld [vmem:[%s193 + $0x3d0] sm:$0xff]
        %v317 = vld [vmem:[%s193 + $0x3d8] sm:$0xff]
        %v318 = vld [vmem:[%s193 + $0x3e0] sm:$0xff]
        %v319 = vld [vmem:[%s193 + $0x3e8] sm:$0xff]
        %v320 = vld [vmem:[%s193 + $0x3f0] sm:$0xff]
        %v321 = vld [vmem:[%s193 + $0x3f8] sm:$0xff]
        %v322 = vld [vmem:[%s1] sm:$0xff]
        %s323 = sld [smem:[#allocation2]]
        %v324 = vstv %s323
        %v326 = vperm.slane %v322, 0
        %v327 = vperm.slane %v322, 1
        %v328 = vperm.slane %v322, 2
        %v329 = vperm.slane %v322, 3
        %v330 = vperm.slane %v322, 4
        %v331 = vperm.slane %v322, 5
        %v332 = vperm.slane %v322, 6
        %v333 = vperm.slane %v322, 7
        %342 = vmatpush.msra.mxu0 %v209
        %343 = vmatpush.msra.mxu0 %v208
        %344 = vmatpush.msra.mxu0 %v207
        %345 = vmatpush.msra.mxu0 %v206
        %346 = vmatpush.msra.mxu0 %v205
        %347 = vmatpush.msra.mxu0 %v204
        %348 = vmatpush.msra.mxu0 %v203
        %349 = vmatpush.msra.mxu0 %v202
        %350 = vmatpush.msra.mxu0 %v201
        %351 = vmatpush.msra.mxu0 %v200
        %352 = vmatpush.msra.mxu0 %v199
        %353 = vmatpush.msra.mxu0 %v198
        %354 = vmatpush.msra.mxu0 %v197
        %355 = vmatpush.msra.mxu0 %v196
        %356 = vmatpush.msra.mxu0 %v195
        %357 = vmatpush.msra.mxu0 %v194
        %358 = vmatmul.f32.gmra.mxu0 %v326
        %v359 = vpop.f32.mrf.mxu0
        %v360 = vadd.f32 %v324, %v359
        %361 = vdwg.mxu0
        %362 = vmatpush.msra.mxu0 %v225
        %363 = vmatpush.msra.mxu0 %v224
        %364 = vmatpush.msra.mxu0 %v223
        %365 = vmatpush.msra.mxu0 %v222
        %366 = vmatpush.msra.mxu0 %v221
        %367 = vmatpush.msra.mxu0 %v220
        %368 = vmatpush.msra.mxu0 %v219
        %369 = vmatpush.msra.mxu0 %v218
        %370 = vmatpush.msra.mxu0 %v217
        %371 = vmatpush.msra.mxu0 %v216
        %372 = vmatpush.msra.mxu0 %v215
        %373 = vmatpush.msra.mxu0 %v214
        %374 = vmatpush.msra.mxu0 %v213
        %375 = vmatpush.msra.mxu0 %v212
        %376 = vmatpush.msra.mxu0 %v211
        %377 = vmatpush.msra.mxu0 %v210
        %378 = vmatmul.f32.gmra.mxu0 %v327
        %v379 = vpop.f32.mrf.mxu0
        %v380 = vadd.f32 %v360, %v379
        %381 = vdwg.mxu0
        %382 = vmatpush.msra.mxu0 %v241
        %383 = vmatpush.msra.mxu0 %v240
        %384 = vmatpush.msra.mxu0 %v239
        %385 = vmatpush.msra.mxu0 %v238
        %386 = vmatpush.msra.mxu0 %v237
        %387 = vmatpush.msra.mxu0 %v236
        %388 = vmatpush.msra.mxu0 %v235
        %389 = vmatpush.msra.mxu0 %v234
        %390 = vmatpush.msra.mxu0 %v233
        %391 = vmatpush.msra.mxu0 %v232
        %392 = vmatpush.msra.mxu0 %v231
        %393 = vmatpush.msra.mxu0 %v230
        %394 = vmatpush.msra.mxu0 %v229
        %395 = vmatpush.msra.mxu0 %v228
        %396 = vmatpush.msra.mxu0 %v227
        %397 = vmatpush.msra.mxu0 %v226
        %398 = vmatmul.f32.gmra.mxu0 %v328
        %v399 = vpop.f32.mrf.mxu0
        %v400 = vadd.f32 %v380, %v399
        %401 = vdwg.mxu0
        %402 = vmatpush.msra.mxu0 %v257
        %403 = vmatpush.msra.mxu0 %v256
        %404 = vmatpush.msra.mxu0 %v255
        %405 = vmatpush.msra.mxu0 %v254
        %406 = vmatpush.msra.mxu0 %v253
        %407 = vmatpush.msra.mxu0 %v252
        %408 = vmatpush.msra.mxu0 %v251
        %409 = vmatpush.msra.mxu0 %v250
        %410 = vmatpush.msra.mxu0 %v249
        %411 = vmatpush.msra.mxu0 %v248
        %412 = vmatpush.msra.mxu0 %v247
        %413 = vmatpush.msra.mxu0 %v246
        %414 = vmatpush.msra.mxu0 %v245
        %415 = vmatpush.msra.mxu0 %v244
        %416 = vmatpush.msra.mxu0 %v243
        %417 = vmatpush.msra.mxu0 %v242
        %418 = vmatmul.f32.gmra.mxu0 %v329
        %v419 = vpop.f32.mrf.mxu0
        %v420 = vadd.f32 %v400, %v419
        %421 = vdwg.mxu0
        %422 = vmatpush.msra.mxu0 %v273
        %423 = vmatpush.msra.mxu0 %v272
        %424 = vmatpush.msra.mxu0 %v271
        %425 = vmatpush.msra.mxu0 %v270
        %426 = vmatpush.msra.mxu0 %v269
        %427 = vmatpush.msra.mxu0 %v268
        %428 = vmatpush.msra.mxu0 %v267
        %429 = vmatpush.msra.mxu0 %v266
        %430 = vmatpush.msra.mxu0 %v265
        %431 = vmatpush.msra.mxu0 %v264
        %432 = vmatpush.msra.mxu0 %v263
        %433 = vmatpush.msra.mxu0 %v262
        %434 = vmatpush.msra.mxu0 %v261
        %435 = vmatpush.msra.mxu0 %v260
        %436 = vmatpush.msra.mxu0 %v259
        %437 = vmatpush.msra.mxu0 %v258
        %438 = vmatmul.f32.gmra.mxu0 %v330
        %v439 = vpop.f32.mrf.mxu0
        %v440 = vadd.f32 %v420, %v439
        %441 = vdwg.mxu0
        %442 = vmatpush.msra.mxu0 %v289
        %443 = vmatpush.msra.mxu0 %v288
        %444 = vmatpush.msra.mxu0 %v287
        %445 = vmatpush.msra.mxu0 %v286
        %446 = vmatpush.msra.mxu0 %v285
        %447 = vmatpush.msra.mxu0 %v284
        %448 = vmatpush.msra.mxu0 %v283
        %449 = vmatpush.msra.mxu0 %v282
        %450 = vmatpush.msra.mxu0 %v281
        %451 = vmatpush.msra.mxu0 %v280
        %452 = vmatpush.msra.mxu0 %v279
        %453 = vmatpush.msra.mxu0 %v278
        %454 = vmatpush.msra.mxu0 %v277
        %455 = vmatpush.msra.mxu0 %v276
        %456 = vmatpush.msra.mxu0 %v275
        %457 = vmatpush.msra.mxu0 %v274
        %458 = vmatmul.f32.gmra.mxu0 %v331
        %v459 = vpop.f32.mrf.mxu0
        %v460 = vadd.f32 %v440, %v459
        %461 = vdwg.mxu0
        %462 = vmatpush.msra.mxu0 %v305
        %463 = vmatpush.msra.mxu0 %v304
        %464 = vmatpush.msra.mxu0 %v303
        %465 = vmatpush.msra.mxu0 %v302
        %466 = vmatpush.msra.mxu0 %v301
        %467 = vmatpush.msra.mxu0 %v300
        %468 = vmatpush.msra.mxu0 %v299
        %469 = vmatpush.msra.mxu0 %v298
        %470 = vmatpush.msra.mxu0 %v297
        %471 = vmatpush.msra.mxu0 %v296
        %472 = vmatpush.msra.mxu0 %v295
        %473 = vmatpush.msra.mxu0 %v294
        %474 = vmatpush.msra.mxu0 %v293
        %475 = vmatpush.msra.mxu0 %v292
        %476 = vmatpush.msra.mxu0 %v291
        %477 = vmatpush.msra.mxu0 %v290
        %478 = vmatmul.f32.gmra.mxu0 %v332
        %v479 = vpop.f32.mrf.mxu0
        %v480 = vadd.f32 %v460, %v479
        %481 = vdwg.mxu0
        %482 = vmatpush.msra.mxu0 %v321
        %483 = vmatpush.msra.mxu0 %v320
        %484 = vmatpush.msra.mxu0 %v319
        %485 = vmatpush.msra.mxu0 %v318
        %486 = vmatpush.msra.mxu0 %v317
        %487 = vmatpush.msra.mxu0 %v316
        %488 = vmatpush.msra.mxu0 %v315
        %489 = vmatpush.msra.mxu0 %v314
        %490 = vmatpush.msra.mxu0 %v313
        %491 = vmatpush.msra.mxu0 %v312
        %492 = vmatpush.msra.mxu0 %v311
        %493 = vmatpush.msra.mxu0 %v310
        %494 = vmatpush.msra.mxu0 %v309
        %495 = vmatpush.msra.mxu0 %v308
        %496 = vmatpush.msra.mxu0 %v307
        %497 = vmatpush.msra.mxu0 %v306
        %498 = vmatmul.f32.gmra.mxu0 %v333
        %v499 = vpop.f32.mrf.mxu0
        %v500 = vadd.f32 %v480, %v499
        %501 = vdwg.mxu0
        %vm502 = vcmask 122880
        %503 = vst.msk [vmem:[%s185] sm:$0x1] %vm502, %v500
        %s504 = sand.u32 %s110, 1
        %s505 = scalar_lea.sflag [#allocation4], %s504
        %s506 = sand.u32 %s110, 1
        %s507 = scalar_lea.vmem [#allocation3], %s506
        // Predicated region
        $region33: #{tpu_custom_call.1} parent=31 // pred_check
          %p508 = pneg %p120
        $region34: #{tpu_custom_call.1} parent=31 // pred_check_branch
          %510 = sbr.rel (%p508) target = $region36
        $region35: #{tpu_custom_call.1} parent=31 // pred_region
          %512 = vsyncadd %s505, 0
          %s513 = sadd.s32 %s23, %s22
          %s514 = scalar_lea.hbm %s3, %s513
          %s516 = sshll.u32 %s507, 4
          %s517 = int_to_ptr.vmem [resolvable:$true] %s516
          %s518 = sshll.u32 %s514, 4
          %s519 = int_to_ptr.hbm [resolvable:$true] %s518
          %521 = dma.vmem_to_hbm [thread:$0]  %s517, 16, %s519, %s505
        $region36: #{tpu_custom_call.1} parent=31 // pred_fallthru
          _
      $region32: #{tpu_custom_call.1} parent=5 // pred_fallthru
        _
      %p522 = scmp.le.s32.totalorder 2, %s13
      // Predicated region
      $region37: #{tpu_custom_call.1} parent=5 // pred_check
        %p523 = pneg %p522
      $region38: #{tpu_custom_call.1} parent=5 // pred_check_branch
        %525 = sbr.rel (%p523) target = $region40
      $region39: #{tpu_custom_call.1} parent=5 // pred_region
        %s526 = ssub.s32 %s13, 2
        // Predicated region
        $region41: #{tpu_custom_call.1} parent=39 // pred_check
          %p527 = pneg %p126
        $region42: #{tpu_custom_call.1} parent=39 // pred_check_branch
          %529 = sbr.rel (%p527) target = $region44
        $region43: #{tpu_custom_call.1} parent=39 // pred_region
          %s530 = sand.u32 %s111, 1
          %s531 = scalar_lea.sflag [#allocation4], %s530
          %s532 = sand.u32 %s111, 1
          %s533 = scalar_lea.vmem [#allocation3], %s532
          %535 = dma.done %s531, 16
        $region44: #{tpu_custom_call.1} parent=39 // pred_fallthru
          _
      $region40: #{tpu_custom_call.1} parent=5 // pred_fallthru
        _
    $region6: #{tpu_custom_call.1} parent=1 // loop_footer
      %s17 = sadd.s32 1, %s13
    $region7: #{tpu_custom_call.1} parent=1 // loop_footer_branch
      %12 = sbr.rel target = $region3
    $region8: #{tpu_custom_call.1} parent=1 // loop_exit
      _
    %536 = vsyncpa [#allocation4], 1
    %s537 = scalar_lea.sflag [#allocation4], 1
    %538 = vsyncpa %s537, 1

</llo_original>
